<compile_context>
chip_gen: v5e
topology: v5e:2x2
jax: 0.10.0
libtpu: 0.0.40
codegen_flags: <defaults>
</compile_context>

<pallas_src>
import functools

import jax
import jax.numpy as jnp
from jax.experimental import pallas as pl
from jax.experimental.pallas import tpu as pltpu

LANE = 128
SUBLANE = 8
NUM_LAYERS = 5
MAX_TB = 2048      # upper bound on batch-tile rows per grid step (tunable)
MIN_GRID = 4       # target >= this many grid steps for large batches (v7x: 2 TCs)


def _round_up(n, m):
    return ((n + m - 1) // m) * m


def _mlp_kernel(x_ref, w_ref, b_ref, o_ref):
    """Whole 5-layer MLP for one batch tile: 5 bf16 MXU matmuls + f32 bias/ReLU."""
    k_in = x_ref.shape[1]                      # real (8-aligned) input width, static
    h = x_ref[...]                             # (TB, k_in) f32
    # Layer 1: weight statically sliced to the real K, so x never carries 128 lanes.
    h = jnp.dot(h.astype(jnp.bfloat16), w_ref[0, :k_in, :],
                preferred_element_type=jnp.float32)
    h = jnp.maximum(h + b_ref[0:1, :], 0.0)
    for i in range(1, NUM_LAYERS - 1):
        h = jnp.dot(h.astype(jnp.bfloat16), w_ref[i],
                    preferred_element_type=jnp.float32)
        h = jnp.maximum(h + b_ref[i:i + 1, :], 0.0)
    h = jnp.dot(h.astype(jnp.bfloat16), w_ref[NUM_LAYERS - 1],
                preferred_element_type=jnp.float32)
    h = h + b_ref[NUM_LAYERS - 1:NUM_LAYERS, :]
    # TODO(synk): bias adds could be folded into the matmuls via a constant-1
    # lane; skipped since the kernel is x-bandwidth bound, not VPU bound.
    o_ref[...] = h.astype(o_ref.dtype)


def prepare_params(params):
    """One-time packing/padding of the 5 (W, b) pairs.

    Returns:
      w_packed: (5, 128, 128) bf16 — layer i's weight zero-padded (MXU-native).
      b_packed: (8, 128)      f32  — row i holds layer i's bias (rows 5..7 zero,
                kept at 8 rows so the block is a clean (8,128) vreg tile).
    """
    w_packed = jnp.zeros((NUM_LAYERS, LANE, LANE), jnp.float32)
    b_packed = jnp.zeros((SUBLANE, LANE), jnp.float32)
    for i in range(NUM_LAYERS):
        W = params[f"W{i + 1}"]
        b = params[f"b{i + 1}"]
        assert W.shape[0] <= LANE and W.shape[1] <= LANE, (
            "prepare_params assumes all layer dims <= 128")
        w_packed = w_packed.at[i, : W.shape[0], : W.shape[1]].set(W)
        b_packed = b_packed.at[i, : b.shape[0]].set(b)
    return w_packed.astype(jnp.bfloat16), b_packed


@functools.partial(jax.jit, static_argnames=("tb",))
def mid_model_forward(x, w_packed, b_packed, tb=None):
    """x: (B, input_size) f32.  Returns the lane-dense (B, 128) f32 output slab.

    Real outputs live in lanes [:output_size]; padded lanes are exactly 0.
    Keep the slab downstream, or slice (:, :output_size) once at the end.
    """
    B, in_f = x.shape
    assert in_f <= LANE, "input_size must be <= 128 for this kernel"

    # Sublane-align the contraction width only if needed (no-op when in_f % 8 == 0).
    # No 128-lane padding of x and no batch padding.
    k0 = _round_up(in_f, SUBLANE)
    if k0 != in_f:
        x = jnp.pad(x, ((0, 0), (0, k0 - in_f)))

    if tb is None:
        # Large tiles for throughput, but keep >= MIN_GRID steps when B allows
        # so the parallel axis can use both TensorCores on v7x.
        tb = min(MAX_TB, max(SUBLANE, _round_up(pl.cdiv(B, MIN_GRID), SUBLANE)))
    else:
        tb = max(SUBLANE, _round_up(tb, SUBLANE))

    return pl.pallas_call(
        _mlp_kernel,
        out_shape=jax.ShapeDtypeStruct((B, LANE), jnp.float32),
        grid=(pl.cdiv(B, tb),),
        in_specs=[
            # x: one (tb, k0) tile per grid step (partial tail block is masked).
            pl.BlockSpec((tb, k0), lambda i: (i, 0)),
            # Weights/biases: constant block index -> VMEM-resident, no re-DMA.
            pl.BlockSpec((NUM_LAYERS, LANE, LANE), lambda i: (0, 0, 0)),
            pl.BlockSpec((SUBLANE, LANE), lambda i: (0, 0)),
        ],
        out_specs=pl.BlockSpec((tb, LANE), lambda i: (i, 0)),
        compiler_params=pltpu.CompilerParams(
            dimension_semantics=("parallel",),
            vmem_limit_bytes=32 * 1024 * 1024),
    )(x, w_packed, b_packed)


def init_params(key, input_size, output_size):
    """Deterministic init matching nn.Linear shapes (stored as (in, out))."""
    dims = [input_size, 10, 18, 15, 4, output_size]
    params = {}
    for i in range(NUM_LAYERS):
        fan_in, fan_out = dims[i], dims[i + 1]
        key, kw, kb = jax.random.split(key, 3)
        bound = 1.0 / jnp.sqrt(jnp.float32(fan_in))
        params[f"W{i + 1}"] = jax.random.uniform(
            kw, (fan_in, fan_out), jnp.float32, -bound, bound)
        params[f"b{i + 1}"] = jax.random.uniform(
            kb, (fan_out,), jnp.float32, -bound, bound)
    return params


def reference_forward(x, params):
    """Pure-JAX f32 reference of the PyTorch forward, for a sanity check."""
    h = x
    for i in range(1, NUM_LAYERS):
        h = jnp.maximum(h @ params[f"W{i}"] + params[f"b{i}"], 0.0)
    return h @ params[f"W{NUM_LAYERS}"] + params[f"b{NUM_LAYERS}"]


if __name__ == "__main__":
    input_size = 32
    output_size = 8
    batch = 4

    key = jax.random.PRNGKey(0)
    key, kx = jax.random.split(key)
    x = jax.random.normal(kx, (batch, input_size), jnp.float32)
    params = init_params(key, input_size, output_size)

    # One-time parameter packing (hoisted out of the per-call path).
    w_packed, b_packed = prepare_params(params)
    w_packed = jax.device_put(w_packed)
    b_packed = jax.device_put(b_packed)

    out_slab = mid_model_forward(x, w_packed, b_packed)
    out_slab = jax.block_until_ready(out_slab)

    # One-time slice outside the hot jitted path (keep the slab in real pipelines).
    out = out_slab[:, :output_size]

    ref = reference_forward(x, params)
    assert out.shape == (batch, output_size)
    # bf16 weights/activations -> relaxed tolerance vs the f32 reference.
    assert jnp.allclose(out, ref, atol=3e-2, rtol=3e-2), "mismatch vs reference"
    # Padded output lanes must be exactly zero (padding never contaminates).
    assert jnp.all(out_slab[:, output_size:] == 0.0)

    print("KERNEL_OK")
</pallas_src>

<mosaic_0001>
module attributes {stable_mosaic.version = 11 : i64} {
  func.func @_mlp_kernel(%arg0: i32, %arg1: memref<8x32xf32, #tpu.memory_space<vmem>>, %arg2: memref<5x128x128xbf16, #tpu.memory_space<vmem>>, %arg3: memref<8x128xf32, #tpu.memory_space<vmem>>, %arg4: memref<8x128xf32, #tpu.memory_space<vmem>>) attributes {dimension_semantics = [#tpu.dimension_semantics<parallel>], iteration_bounds = array<i64: 1>, scalar_prefetch = 0 : i64, scratch_operands = 0 : i64, tpu.core_type = #tpu.core_type<tc>, window_params = [{transform_indices = @transform_0, window_bounds = array<i64: 8, 32>}, {pipeline_mode = #tpu.pipeline_mode<synchronous>, transform_indices = @transform_1, window_bounds = array<i64: 5, 128, 128>}, {pipeline_mode = #tpu.pipeline_mode<synchronous>, transform_indices = @transform_2, window_bounds = array<i64: 8, 128>}, {transform_indices = @transform_3, window_bounds = array<i64: 8, 128>}]} {
    %c0 = arith.constant 0 : index
    %c0_0 = arith.constant 0 : index
    %0 = vector.load %arg1[%c0, %c0_0] : memref<8x32xf32, #tpu.memory_space<vmem>>, vector<8x32xf32>
    %1 = arith.truncf %0 : vector<8x32xf32> to vector<8x32xbf16>
    %c0_1 = arith.constant 0 : index
    %c0_2 = arith.constant 0 : index
    %c0_3 = arith.constant 0 : index
    %2 = vector.load %arg2[%c0_1, %c0_2, %c0_3] : memref<5x128x128xbf16, #tpu.memory_space<vmem>>, vector<1x32x128xbf16>
    %3 = vector.shape_cast %2 : vector<1x32x128xbf16> to vector<32x128xbf16>
    %cst = arith.constant dense<0.000000e+00> : vector<8x128xf32>
    %4 = tpu.matmul %1, %3, %cst {dimension_numbers = #tpu.dot_dimension_numbers<[1], [0], [0], [1], [0, 0, 1, 1], [], []>} : vector<8x32xbf16>, vector<32x128xbf16>, vector<8x128xf32> -> vector<8x128xf32>
    %c0_4 = arith.constant 0 : index
    %c0_5 = arith.constant 0 : index
    %5 = vector.load %arg3[%c0_4, %c0_5] : memref<8x128xf32, #tpu.memory_space<vmem>>, vector<1x128xf32>
    %6 = vector.broadcast %5 : vector<1x128xf32> to vector<8x128xf32>
    %7 = arith.addf %4, %6 : vector<8x128xf32>
    %cst_6 = arith.constant 0.000000e+00 : f32
    %8 = vector.broadcast %cst_6 : f32 to vector<8x128xf32>
    %9 = arith.maximumf %7, %8 : vector<8x128xf32>
    %10 = arith.truncf %9 : vector<8x128xf32> to vector<8x128xbf16>
    %c1 = arith.constant 1 : index
    %c0_7 = arith.constant 0 : index
    %c0_8 = arith.constant 0 : index
    %11 = vector.load %arg2[%c1, %c0_7, %c0_8] : memref<5x128x128xbf16, #tpu.memory_space<vmem>>, vector<1x128x128xbf16>
    %12 = vector.shape_cast %11 : vector<1x128x128xbf16> to vector<128x128xbf16>
    %cst_9 = arith.constant dense<0.000000e+00> : vector<8x128xf32>
    %13 = tpu.matmul %10, %12, %cst_9 {dimension_numbers = #tpu.dot_dimension_numbers<[1], [0], [0], [1], [0, 0, 1, 1], [], []>} : vector<8x128xbf16>, vector<128x128xbf16>, vector<8x128xf32> -> vector<8x128xf32>
    %c1_10 = arith.constant 1 : index
    %c0_11 = arith.constant 0 : index
    %14 = vector.load %arg3[%c1_10, %c0_11] : memref<8x128xf32, #tpu.memory_space<vmem>>, vector<1x128xf32>
    %15 = vector.broadcast %14 : vector<1x128xf32> to vector<8x128xf32>
    %16 = arith.addf %13, %15 : vector<8x128xf32>
    %cst_12 = arith.constant 0.000000e+00 : f32
    %17 = vector.broadcast %cst_12 : f32 to vector<8x128xf32>
    %18 = arith.maximumf %16, %17 : vector<8x128xf32>
    %19 = arith.truncf %18 : vector<8x128xf32> to vector<8x128xbf16>
    %c2 = arith.constant 2 : index
    %c0_13 = arith.constant 0 : index
    %c0_14 = arith.constant 0 : index
    %20 = vector.load %arg2[%c2, %c0_13, %c0_14] : memref<5x128x128xbf16, #tpu.memory_space<vmem>>, vector<1x128x128xbf16>
    %21 = vector.shape_cast %20 : vector<1x128x128xbf16> to vector<128x128xbf16>
    %cst_15 = arith.constant dense<0.000000e+00> : vector<8x128xf32>
    %22 = tpu.matmul %19, %21, %cst_15 {dimension_numbers = #tpu.dot_dimension_numbers<[1], [0], [0], [1], [0, 0, 1, 1], [], []>} : vector<8x128xbf16>, vector<128x128xbf16>, vector<8x128xf32> -> vector<8x128xf32>
    %c2_16 = arith.constant 2 : index
    %c0_17 = arith.constant 0 : index
    %23 = vector.load %arg3[%c2_16, %c0_17] : memref<8x128xf32, #tpu.memory_space<vmem>>, vector<1x128xf32>
    %24 = vector.broadcast %23 : vector<1x128xf32> to vector<8x128xf32>
    %25 = arith.addf %22, %24 : vector<8x128xf32>
    %cst_18 = arith.constant 0.000000e+00 : f32
    %26 = vector.broadcast %cst_18 : f32 to vector<8x128xf32>
    %27 = arith.maximumf %25, %26 : vector<8x128xf32>
    %28 = arith.truncf %27 : vector<8x128xf32> to vector<8x128xbf16>
    %c3 = arith.constant 3 : index
    %c0_19 = arith.constant 0 : index
    %c0_20 = arith.constant 0 : index
    %29 = vector.load %arg2[%c3, %c0_19, %c0_20] : memref<5x128x128xbf16, #tpu.memory_space<vmem>>, vector<1x128x128xbf16>
    %30 = vector.shape_cast %29 : vector<1x128x128xbf16> to vector<128x128xbf16>
    %cst_21 = arith.constant dense<0.000000e+00> : vector<8x128xf32>
    %31 = tpu.matmul %28, %30, %cst_21 {dimension_numbers = #tpu.dot_dimension_numbers<[1], [0], [0], [1], [0, 0, 1, 1], [], []>} : vector<8x128xbf16>, vector<128x128xbf16>, vector<8x128xf32> -> vector<8x128xf32>
    %c3_22 = arith.constant 3 : index
    %c0_23 = arith.constant 0 : index
    %32 = vector.load %arg3[%c3_22, %c0_23] : memref<8x128xf32, #tpu.memory_space<vmem>>, vector<1x128xf32>
    %33 = vector.broadcast %32 : vector<1x128xf32> to vector<8x128xf32>
    %34 = arith.addf %31, %33 : vector<8x128xf32>
    %cst_24 = arith.constant 0.000000e+00 : f32
    %35 = vector.broadcast %cst_24 : f32 to vector<8x128xf32>
    %36 = arith.maximumf %34, %35 : vector<8x128xf32>
    %37 = arith.truncf %36 : vector<8x128xf32> to vector<8x128xbf16>
    %c4 = arith.constant 4 : index
    %c0_25 = arith.constant 0 : index
    %c0_26 = arith.constant 0 : index
    %38 = vector.load %arg2[%c4, %c0_25, %c0_26] : memref<5x128x128xbf16, #tpu.memory_space<vmem>>, vector<1x128x128xbf16>
    %39 = vector.shape_cast %38 : vector<1x128x128xbf16> to vector<128x128xbf16>
    %cst_27 = arith.constant dense<0.000000e+00> : vector<8x128xf32>
    %40 = tpu.matmul %37, %39, %cst_27 {dimension_numbers = #tpu.dot_dimension_numbers<[1], [0], [0], [1], [0, 0, 1, 1], [], []>} : vector<8x128xbf16>, vector<128x128xbf16>, vector<8x128xf32> -> vector<8x128xf32>
    %c4_28 = arith.constant 4 : index
    %c0_29 = arith.constant 0 : index
    %41 = vector.load %arg3[%c4_28, %c0_29] : memref<8x128xf32, #tpu.memory_space<vmem>>, vector<1x128xf32>
    %42 = vector.broadcast %41 : vector<1x128xf32> to vector<8x128xf32>
    %43 = arith.addf %40, %42 : vector<8x128xf32>
    %c0_30 = arith.constant 0 : index
    %c0_31 = arith.constant 0 : index
    %44 = vector.load %arg4[%c0_30, %c0_31] : memref<8x128xf32, #tpu.memory_space<vmem>>, vector<8x128xf32>
    tpu.vector_store %arg4[%c0_30, %c0_31], %43 {strides = array<i32>} : memref<8x128xf32, #tpu.memory_space<vmem>>, vector<8x128xf32>,
    return
  }
  func.func @transform_0(%arg0: i32) -> (i32, i32) {
    %c0_i32 = arith.constant 0 : i32
    %c0_i32_0 = arith.constant 0 : i32
    return %arg0, %c0_i32 : i32, i32
  }
  func.func @transform_1(%arg0: i32) -> (i32, i32, i32) {
    %c0_i32 = arith.constant 0 : i32
    %c0_i32_0 = arith.constant 0 : i32
    %c0_i32_1 = arith.constant 0 : i32
    %c0_i32_2 = arith.constant 0 : i32
    return %c0_i32, %c0_i32_0, %c0_i32_1 : i32, i32, i32
  }
  func.func @transform_2(%arg0: i32) -> (i32, i32) {
    %c0_i32 = arith.constant 0 : i32
    %c0_i32_0 = arith.constant 0 : i32
    %c0_i32_1 = arith.constant 0 : i32
    return %c0_i32, %c0_i32_0 : i32, i32
  }
  func.func @transform_3(%arg0: i32) -> (i32, i32) {
    %c0_i32 = arith.constant 0 : i32
    %c0_i32_0 = arith.constant 0 : i32
    return %arg0, %c0_i32 : i32, i32
  }
}

</mosaic_0001>

<llo_original>
// kernel: mid_model_forward.1
$region0: #{mid_model_forward.1}
  #allocation0 [shape = 'u32[]', space=smem, size = 0x4, offset = 0x4, fixed_abs, tag = 'smem constant byte address 0x4 - core index']
  #allocation1 [shape = 'u32[72,128]{1,0:T(1,128)}', space=vmem, size = 0x9000, scoped, tag = 'internal scratch']
  %s0 = inlined_call_operand.hbm [shape: f32[4,32], index: 0, kind: input, shape index: {}]
  %s1 = inlined_call_operand.hbm [shape: bf16[5,128,128], index: 1, kind: input, shape index: {}]
  %s2 = inlined_call_operand.hbm [shape: f32[8,128], index: 2, kind: input, shape index: {}]
  %s3 = inlined_call_operand.hbm [shape: f32[4,128], index: 3, kind: output, shape index: {}]
  %s4 = sld [smem:[#allocation0]]
  $region34: #{mid_model_forward.1} parent=0
    _
  %s6 = ssub.s32 1, %s4
  %s7 = scalar_select 0, %s6, %s4
  $region1: #{mid_model_forward.1} parent=0
    #allocation2 [shape = 'u8[4096]{0}', space=vmem, size = 0x1000, scoped, tag = 'input window, operand 0, single buffered']
    #allocation3 [shape = 's32[1]{0}', space=sflag, size = 0x4, scoped, tag = 'scoped memory for mid_model_forward.1']
    #allocation4 [shape = 's32[1]{0}', space=sflag, size = 0x4, scoped, tag = 'scoped memory for mid_model_forward.1']
    #allocation5 [shape = 'u8[163840]{0}', space=vmem, size = 0x28000, scoped, tag = 'input window, operand 1, single buffered']
    #allocation6 [shape = 's32[1]{0}', space=sflag, size = 0x4, scoped, tag = 'scoped memory for mid_model_forward.1']
    #allocation7 [shape = 'u8[4096]{0}', space=vmem, size = 0x1000, scoped, tag = 'input window, operand 2, single buffered']
    #allocation8 [shape = 'u8[4096]{0}', space=vmem, size = 0x1000, scoped, tag = 'output window, operand 0, single buffered']
    %8 = vsyncpa [#allocation3], 0
    %9 = vsyncpa [#allocation6], 0
    %10 = vsyncpa [#allocation4], 0
    // Predicated region
    $region2: #{mid_model_forward.1} parent=1 // pred_check
      _
    $region3: #{mid_model_forward.1} parent=1 // pred_check_branch
      %12 = sbr.rel (0) target = $region5
    $region4: #{mid_model_forward.1} parent=1 // pred_region
      %14 = vsyncadd [#allocation3], 64
      %s15 = sshll.u32 %s0, 4
      %s16 = int_to_ptr.hbm [resolvable:$true] %s15
      %s17 = sshll.u32 [#allocation2], 4
      %s18 = int_to_ptr.vmem [resolvable:$true] %s17
      %23 = dma.hbm_to_vmem [thread:$0]  %s16, 64, %s18, [#allocation3], 64, 64, 4
    $region5: #{mid_model_forward.1} parent=1 // pred_fallthru
      _
    // Predicated region
    $region6: #{mid_model_forward.1} parent=1 // pred_check
      _
    $region7: #{mid_model_forward.1} parent=1 // pred_check_branch
      %25 = sbr.rel (0) target = $region9
    $region8: #{mid_model_forward.1} parent=1 // pred_region
      %27 = vsyncadd [#allocation6], 0
      %s28 = sshll.u32 %s1, 4
      %s29 = int_to_ptr.hbm [resolvable:$true] %s28
      %s30 = sshll.u32 [#allocation5], 4
      %s31 = int_to_ptr.vmem [resolvable:$true] %s30
      %36 = dma.hbm_to_vmem [thread:$0]  %s29, 5120, %s31, [#allocation6], 64, 64, 4
    $region9: #{mid_model_forward.1} parent=1 // pred_fallthru
      _
    // Predicated region
    $region10: #{mid_model_forward.1} parent=1 // pred_check
      _
    $region11: #{mid_model_forward.1} parent=1 // pred_check_branch
      %38 = sbr.rel (0) target = $region13
    $region12: #{mid_model_forward.1} parent=1 // pred_region
      %40 = vsyncadd [#allocation6], 0
      %s42 = sshll.u32 %s2, 4
      %s43 = int_to_ptr.hbm [resolvable:$true] %s42
      %s44 = sshll.u32 [#allocation7], 4
      %s45 = int_to_ptr.vmem [resolvable:$true] %s44
      %47 = dma.hbm_to_vmem [thread:$0]  %s43, 128, %s45, [#allocation6]
    $region13: #{mid_model_forward.1} parent=1 // pred_fallthru
      _
    // Predicated region
    $region14: #{mid_model_forward.1} parent=1 // pred_check
      _
    $region15: #{mid_model_forward.1} parent=1 // pred_check_branch
      %49 = sbr.rel (0) target = $region17
    $region16: #{mid_model_forward.1} parent=1 // pred_region
      %51 = dma.done [#allocation3], 128
    $region17: #{mid_model_forward.1} parent=1 // pred_fallthru
      _
    // Predicated region
    $region18: #{mid_model_forward.1} parent=1 // pred_check
      _
    $region19: #{mid_model_forward.1} parent=1 // pred_check_branch
      %53 = sbr.rel (0) target = $region21
    $region20: #{mid_model_forward.1} parent=1 // pred_region
      %55 = dma.done [#allocation6], 5120
    $region21: #{mid_model_forward.1} parent=1 // pred_fallthru
      _
    // Predicated region
    $region22: #{mid_model_forward.1} parent=1 // pred_check
      _
    $region23: #{mid_model_forward.1} parent=1 // pred_check_branch
      %57 = sbr.rel (0) target = $region25
    $region24: #{mid_model_forward.1} parent=1 // pred_region
      %59 = dma.done [#allocation6], 128
    $region25: #{mid_model_forward.1} parent=1 // pred_fallthru
      _
    %v61 = vld [vmem:[#allocation2] sm:$0xff]
    %v62 = vpack.c.bf16 %v61, %v61
    %v63 = vld [vmem:[#allocation5] sm:$0xf]
    %v64 = vld [vmem:[#allocation5 + $0x4] sm:$0xf]
    %v65 = vld [vmem:[#allocation5 + $0x8] sm:$0xf]
    %v66 = vld [vmem:[#allocation5 + $0xc] sm:$0xf]
    %v67 = vld [vmem:[#allocation7] sm:$0x1]
    %v68 = vperm.slane %v67, 0
    %v73 = vunpack.c.l.b16 %v63
    %v74 = vunpack.c.l.b16 %v64
    %v75 = vunpack.c.l.b16 %v65
    %v76 = vunpack.c.l.b16 %v66
    %v77 = vpack.c.b16 %v74, %v73
    %v78 = vpack.c.b16 %v76, %v75
    %vm81 = vcmask 261120
    %v83 = vsel %vm81, %v62, 0
    %85 = vmatpush.bf16.msra.mxu0 0
    %86 = vmatpush.bf16.msra.mxu0 0
    %87 = vmatpush.bf16.msra.mxu0 0
    %88 = vmatpush.bf16.msra.mxu0 0
    %89 = vmatpush.bf16.msra.mxu0 0
    %90 = vmatpush.bf16.msra.mxu0 0
    %91 = vmatpush.bf16.msra.mxu0 %v78
    %92 = vmatpush.bf16.msra.mxu0 %v77
    %93 = vmatmul.bf16.gmra.mxu0 %v83
    %v94 = vpop.f32.mrf.mxu0
    %v95 = vadd.f32 %v68, %v94
    %v96 = vpop.f32.mrf.mxu0
    %97 = vdwg.mxu0
    %v98 = vmax.f32 %v95, 0.0
    %v99 = vpack.c.bf16 %v98, %v98
    %s100 = scalar_lea.vmem [#allocation5], 64
    %v101 = vld [vmem:[%s100] sm:$0xf]
    %v102 = vld [vmem:[%s100 + $0x4] sm:$0xf]
    %v103 = vld [vmem:[%s100 + $0x8] sm:$0xf]
    %v104 = vld [vmem:[%s100 + $0xc] sm:$0xf]
    %v105 = vld [vmem:[%s100 + $0x10] sm:$0xf]
    %v106 = vld [vmem:[%s100 + $0x14] sm:$0xf]
    %v107 = vld [vmem:[%s100 + $0x18] sm:$0xf]
    %v108 = vld [vmem:[%s100 + $0x1c] sm:$0xf]
    %v109 = vld [vmem:[%s100 + $0x20] sm:$0xf]
    %v110 = vld [vmem:[%s100 + $0x24] sm:$0xf]
    %v111 = vld [vmem:[%s100 + $0x28] sm:$0xf]
    %v112 = vld [vmem:[%s100 + $0x2c] sm:$0xf]
    %v113 = vld [vmem:[%s100 + $0x30] sm:$0xf]
    %v114 = vld [vmem:[%s100 + $0x34] sm:$0xf]
    %v115 = vld [vmem:[%s100 + $0x38] sm:$0xf]
    %v116 = vld [vmem:[%s100 + $0x3c] sm:$0xf]
    %v117 = vld [vmem:[#allocation7 + $0x1] sm:$0x1]
    %v118 = vperm.slane %v117, 0
    %v135 = vunpack.c.l.b16 %v101
    %v136 = vunpack.c.l.b16 %v102
    %v137 = vunpack.c.l.b16 %v103
    %v138 = vunpack.c.l.b16 %v104
    %v139 = vunpack.c.l.b16 %v105
    %v140 = vunpack.c.l.b16 %v106
    %v141 = vunpack.c.l.b16 %v107
    %v142 = vunpack.c.l.b16 %v108
    %v143 = vunpack.c.l.b16 %v109
    %v144 = vunpack.c.l.b16 %v110
    %v145 = vunpack.c.l.b16 %v111
    %v146 = vunpack.c.l.b16 %v112
    %v147 = vunpack.c.l.b16 %v113
    %v148 = vunpack.c.l.b16 %v114
    %v149 = vunpack.c.l.b16 %v115
    %v150 = vunpack.c.l.b16 %v116
    %v151 = vpack.c.b16 %v136, %v135
    %v152 = vpack.c.b16 %v138, %v137
    %v153 = vpack.c.b16 %v140, %v139
    %v154 = vpack.c.b16 %v142, %v141
    %v155 = vpack.c.b16 %v144, %v143
    %v156 = vpack.c.b16 %v146, %v145
    %v157 = vpack.c.b16 %v148, %v147
    %v158 = vpack.c.b16 %v150, %v149
    %167 = vmatpush.bf16.msra.mxu0 %v158
    %168 = vmatpush.bf16.msra.mxu0 %v157
    %169 = vmatpush.bf16.msra.mxu0 %v156
    %170 = vmatpush.bf16.msra.mxu0 %v155
    %171 = vmatpush.bf16.msra.mxu0 %v154
    %172 = vmatpush.bf16.msra.mxu0 %v153
    %173 = vmatpush.bf16.msra.mxu0 %v152
    %174 = vmatpush.bf16.msra.mxu0 %v151
    %175 = vmatmul.bf16.gmra.mxu0 %v99
    %v176 = vpop.f32.mrf.mxu0
    %v177 = vadd.f32 %v118, %v176
    %v178 = vpop.f32.mrf.mxu0
    %179 = vdwg.mxu0
    %v180 = vmax.f32 %v177, 0.0
    %v181 = vpack.c.bf16 %v180, %v180
    %s182 = scalar_lea.vmem [#allocation5], 128
    %v183 = vld [vmem:[%s182] sm:$0xf]
    %v184 = vld [vmem:[%s182 + $0x4] sm:$0xf]
    %v185 = vld [vmem:[%s182 + $0x8] sm:$0xf]
    %v186 = vld [vmem:[%s182 + $0xc] sm:$0xf]
    %v187 = vld [vmem:[%s182 + $0x10] sm:$0xf]
    %v188 = vld [vmem:[%s182 + $0x14] sm:$0xf]
    %v189 = vld [vmem:[%s182 + $0x18] sm:$0xf]
    %v190 = vld [vmem:[%s182 + $0x1c] sm:$0xf]
    %v191 = vld [vmem:[%s182 + $0x20] sm:$0xf]
    %v192 = vld [vmem:[%s182 + $0x24] sm:$0xf]
    %v193 = vld [vmem:[%s182 + $0x28] sm:$0xf]
    %v194 = vld [vmem:[%s182 + $0x2c] sm:$0xf]
    %v195 = vld [vmem:[%s182 + $0x30] sm:$0xf]
    %v196 = vld [vmem:[%s182 + $0x34] sm:$0xf]
    %v197 = vld [vmem:[%s182 + $0x38] sm:$0xf]
    %v198 = vld [vmem:[%s182 + $0x3c] sm:$0xf]
    %v199 = vld [vmem:[#allocation7 + $0x2] sm:$0x1]
    %v200 = vperm.slane %v199, 0
    %v217 = vunpack.c.l.b16 %v183
    %v218 = vunpack.c.l.b16 %v184
    %v219 = vunpack.c.l.b16 %v185
    %v220 = vunpack.c.l.b16 %v186
    %v221 = vunpack.c.l.b16 %v187
    %v222 = vunpack.c.l.b16 %v188
    %v223 = vunpack.c.l.b16 %v189
    %v224 = vunpack.c.l.b16 %v190
    %v225 = vunpack.c.l.b16 %v191
    %v226 = vunpack.c.l.b16 %v192
    %v227 = vunpack.c.l.b16 %v193
    %v228 = vunpack.c.l.b16 %v194
    %v229 = vunpack.c.l.b16 %v195
    %v230 = vunpack.c.l.b16 %v196
    %v231 = vunpack.c.l.b16 %v197
    %v232 = vunpack.c.l.b16 %v198
    %v233 = vpack.c.b16 %v218, %v217
    %v234 = vpack.c.b16 %v220, %v219
    %v235 = vpack.c.b16 %v222, %v221
    %v236 = vpack.c.b16 %v224, %v223
    %v237 = vpack.c.b16 %v226, %v225
    %v238 = vpack.c.b16 %v228, %v227
    %v239 = vpack.c.b16 %v230, %v229
    %v240 = vpack.c.b16 %v232, %v231
    %249 = vmatpush.bf16.msra.mxu0 %v240
    %250 = vmatpush.bf16.msra.mxu0 %v239
    %251 = vmatpush.bf16.msra.mxu0 %v238
    %252 = vmatpush.bf16.msra.mxu0 %v237
    %253 = vmatpush.bf16.msra.mxu0 %v236
    %254 = vmatpush.bf16.msra.mxu0 %v235
    %255 = vmatpush.bf16.msra.mxu0 %v234
    %256 = vmatpush.bf16.msra.mxu0 %v233
    %257 = vmatmul.bf16.gmra.mxu0 %v181
    %v258 = vpop.f32.mrf.mxu0
    %v259 = vadd.f32 %v200, %v258
    %v260 = vpop.f32.mrf.mxu0
    %261 = vdwg.mxu0
    %v262 = vmax.f32 %v259, 0.0
    %v263 = vpack.c.bf16 %v262, %v262
    %s264 = scalar_lea.vmem [#allocation5], 192
    %v265 = vld [vmem:[%s264] sm:$0xf]
    %v266 = vld [vmem:[%s264 + $0x4] sm:$0xf]
    %v267 = vld [vmem:[%s264 + $0x8] sm:$0xf]
    %v268 = vld [vmem:[%s264 + $0xc] sm:$0xf]
    %v269 = vld [vmem:[%s264 + $0x10] sm:$0xf]
    %v270 = vld [vmem:[%s264 + $0x14] sm:$0xf]
    %v271 = vld [vmem:[%s264 + $0x18] sm:$0xf]
    %v272 = vld [vmem:[%s264 + $0x1c] sm:$0xf]
    %v273 = vld [vmem:[%s264 + $0x20] sm:$0xf]
    %v274 = vld [vmem:[%s264 + $0x24] sm:$0xf]
    %v275 = vld [vmem:[%s264 + $0x28] sm:$0xf]
    %v276 = vld [vmem:[%s264 + $0x2c] sm:$0xf]
    %v277 = vld [vmem:[%s264 + $0x30] sm:$0xf]
    %v278 = vld [vmem:[%s264 + $0x34] sm:$0xf]
    %v279 = vld [vmem:[%s264 + $0x38] sm:$0xf]
    %v280 = vld [vmem:[%s264 + $0x3c] sm:$0xf]
    %v281 = vld [vmem:[#allocation7 + $0x3] sm:$0x1]
    %v282 = vperm.slane %v281, 0
    %v299 = vunpack.c.l.b16 %v265
    %v300 = vunpack.c.l.b16 %v266
    %v301 = vunpack.c.l.b16 %v267
    %v302 = vunpack.c.l.b16 %v268
    %v303 = vunpack.c.l.b16 %v269
    %v304 = vunpack.c.l.b16 %v270
    %v305 = vunpack.c.l.b16 %v271
    %v306 = vunpack.c.l.b16 %v272
    %v307 = vunpack.c.l.b16 %v273
    %v308 = vunpack.c.l.b16 %v274
    %v309 = vunpack.c.l.b16 %v275
    %v310 = vunpack.c.l.b16 %v276
    %v311 = vunpack.c.l.b16 %v277
    %v312 = vunpack.c.l.b16 %v278
    %v313 = vunpack.c.l.b16 %v279
    %v314 = vunpack.c.l.b16 %v280
    %v315 = vpack.c.b16 %v300, %v299
    %v316 = vpack.c.b16 %v302, %v301
    %v317 = vpack.c.b16 %v304, %v303
    %v318 = vpack.c.b16 %v306, %v305
    %v319 = vpack.c.b16 %v308, %v307
    %v320 = vpack.c.b16 %v310, %v309
    %v321 = vpack.c.b16 %v312, %v311
    %v322 = vpack.c.b16 %v314, %v313
    %331 = vmatpush.bf16.msra.mxu0 %v322
    %332 = vmatpush.bf16.msra.mxu0 %v321
    %333 = vmatpush.bf16.msra.mxu0 %v320
    %334 = vmatpush.bf16.msra.mxu0 %v319
    %335 = vmatpush.bf16.msra.mxu0 %v318
    %336 = vmatpush.bf16.msra.mxu0 %v317
    %337 = vmatpush.bf16.msra.mxu0 %v316
    %338 = vmatpush.bf16.msra.mxu0 %v315
    %339 = vmatmul.bf16.gmra.mxu0 %v263
    %v340 = vpop.f32.mrf.mxu0
    %v341 = vadd.f32 %v282, %v340
    %v342 = vpop.f32.mrf.mxu0
    %343 = vdwg.mxu0
    %v344 = vmax.f32 %v341, 0.0
    %v345 = vpack.c.bf16 %v344, %v344
    %s346 = scalar_lea.vmem [#allocation5], 256
    %v347 = vld [vmem:[%s346] sm:$0xf]
    %v348 = vld [vmem:[%s346 + $0x4] sm:$0xf]
    %v349 = vld [vmem:[%s346 + $0x8] sm:$0xf]
    %v350 = vld [vmem:[%s346 + $0xc] sm:$0xf]
    %v351 = vld [vmem:[%s346 + $0x10] sm:$0xf]
    %v352 = vld [vmem:[%s346 + $0x14] sm:$0xf]
    %v353 = vld [vmem:[%s346 + $0x18] sm:$0xf]
    %v354 = vld [vmem:[%s346 + $0x1c] sm:$0xf]
    %v355 = vld [vmem:[%s346 + $0x20] sm:$0xf]
    %v356 = vld [vmem:[%s346 + $0x24] sm:$0xf]
    %v357 = vld [vmem:[%s346 + $0x28] sm:$0xf]
    %v358 = vld [vmem:[%s346 + $0x2c] sm:$0xf]
    %v359 = vld [vmem:[%s346 + $0x30] sm:$0xf]
    %v360 = vld [vmem:[%s346 + $0x34] sm:$0xf]
    %v361 = vld [vmem:[%s346 + $0x38] sm:$0xf]
    %v362 = vld [vmem:[%s346 + $0x3c] sm:$0xf]
    %v363 = vld [vmem:[#allocation7 + $0x4] sm:$0x1]
    %v364 = vperm.slane %v363, 0
    %v381 = vunpack.c.l.b16 %v347
    %v382 = vunpack.c.l.b16 %v348
    %v383 = vunpack.c.l.b16 %v349
    %v384 = vunpack.c.l.b16 %v350
    %v385 = vunpack.c.l.b16 %v351
    %v386 = vunpack.c.l.b16 %v352
    %v387 = vunpack.c.l.b16 %v353
    %v388 = vunpack.c.l.b16 %v354
    %v389 = vunpack.c.l.b16 %v355
    %v390 = vunpack.c.l.b16 %v356
    %v391 = vunpack.c.l.b16 %v357
    %v392 = vunpack.c.l.b16 %v358
    %v393 = vunpack.c.l.b16 %v359
    %v394 = vunpack.c.l.b16 %v360
    %v395 = vunpack.c.l.b16 %v361
    %v396 = vunpack.c.l.b16 %v362
    %v397 = vpack.c.b16 %v382, %v381
    %v398 = vpack.c.b16 %v384, %v383
    %v399 = vpack.c.b16 %v386, %v385
    %v400 = vpack.c.b16 %v388, %v387
    %v401 = vpack.c.b16 %v390, %v389
    %v402 = vpack.c.b16 %v392, %v391
    %v403 = vpack.c.b16 %v394, %v393
    %v404 = vpack.c.b16 %v396, %v395
    %413 = vmatpush.bf16.msra.mxu0 %v404
    %414 = vmatpush.bf16.msra.mxu0 %v403
    %415 = vmatpush.bf16.msra.mxu0 %v402
    %416 = vmatpush.bf16.msra.mxu0 %v401
    %417 = vmatpush.bf16.msra.mxu0 %v400
    %418 = vmatpush.bf16.msra.mxu0 %v399
    %419 = vmatpush.bf16.msra.mxu0 %v398
    %420 = vmatpush.bf16.msra.mxu0 %v397
    %421 = vmatmul.bf16.gmra.mxu0 %v345
    %v422 = vpop.f32.mrf.mxu0
    %v423 = vadd.f32 %v364, %v422
    %v424 = vpop.f32.mrf.mxu0
    %425 = vdwg.mxu0
    %426 = vst [vmem:[#allocation8] sm:$0xff] %v423
    // Predicated region
    $region26: #{mid_model_forward.1} parent=1 // pred_check
      _
    $region27: #{mid_model_forward.1} parent=1 // pred_check_branch
      %428 = sbr.rel (0) target = $region29
    $region28: #{mid_model_forward.1} parent=1 // pred_region
      %430 = vsyncadd [#allocation4], 64
      %s431 = sshll.u32 [#allocation8], 4
      %s432 = int_to_ptr.vmem [resolvable:$true] %s431
      %s433 = sshll.u32 %s3, 4
      %s434 = int_to_ptr.hbm [resolvable:$true] %s433
      %439 = dma.vmem_to_hbm [thread:$0]  %s432, 64, %s434, [#allocation4], 64, 64, 4
    $region29: #{mid_model_forward.1} parent=1 // pred_fallthru
      _
    // Predicated region
    $region30: #{mid_model_forward.1} parent=1 // pred_check
      _
    $region31: #{mid_model_forward.1} parent=1 // pred_check_branch
      %441 = sbr.rel (0) target = $region33
    $region32: #{mid_model_forward.1} parent=1 // pred_region
      %443 = dma.done [#allocation4], 128
    $region33: #{mid_model_forward.1} parent=1 // pred_fallthru
      _
    %444 = vsyncpa [#allocation3], 1
    %445 = vsyncpa [#allocation6], 1
    %446 = vsyncpa [#allocation4], 1

</llo_original>
